<compile_context>
chip_gen: v6e
topology: v6e:2x2x1
jax: 0.10.0
libtpu: 0.0.40
codegen_flags: <defaults>
</compile_context>

<pallas_src>
import functools
import math

import numpy as np
import jax
import jax.numpy as jnp
from jax.experimental import pallas as pl
from jax.experimental.pallas import tpu as pltpu

LANES = 128


# ----------------------------------------------------------------------------
# Constant 0/1 helper matrices (pure compile-time constants, folded by XLA).
#   rows 0:D      S    : S[d, d*N+j]    = 1   (lane expansion)
#   rows 8:8+N    diag : diag[i, d*N+j] = (i == j)
#   rows 16:16+W  R    : R[d*N+j, j]    = 1   (per-dim block-sum reduction)
# ----------------------------------------------------------------------------
def _build_consts(N, D):
    W = N * D
    c = np.zeros((16 + W, LANES), np.float32)
    for w in range(W):
        d, j = divmod(w, N)
        c[d, w] = 1.0
        c[8 + j, w] = 1.0
        c[16 + w, j] = 1.0
    return jnp.asarray(c)


# ----------------------------------------------------------------------------
# Pallas kernel: computes the full scalar tree loss.
# ----------------------------------------------------------------------------
def tree_loss_kernel(scr_ref, slab_ref, consts_ref, out_ref, *, N, D):
    W = N * D
    scr = scr_ref[0, 0]                                   # single_circle_range

    # ---- lane-0-aligned, sublane-stacked static sub-views (cheap loads) ----
    l      = slab_ref[pl.ds(0, N), pl.ds(0, D)]           # (N, D) lower bounds
    h      = slab_ref[pl.ds(N, N), pl.ds(0, D)]           # (N, D) upper bounds
    omegaN = slab_ref[pl.ds(2 * N, N), pl.ds(0, N)]       # (N, N) omega normed
    inv_lv = slab_ref[pl.ds(3 * N, N), pl.ds(0, 1)]       # (N, 1) 1 / leaves
    par    = slab_ref[pl.ds(4 * N, 2), pl.ds(0, D)]       # (2, D) [p_l ; p_h]
    p_l, p_h = par[0:1, :], par[1:2, :]

    S    = consts_ref[pl.ds(0, D), pl.ds(0, W)]           # (D, W)
    diag = consts_ref[pl.ds(8, N), pl.ds(0, W)]           # (N, W)
    R    = consts_ref[pl.ds(16, W), pl.ds(0, N)]          # (W, N)

    ones_nn = jnp.ones((N, N), jnp.float32)
    offdiag = 1.0 - diag

    def frecip(x):
        # EUP approx reciprocal + one Newton step (~f32-accurate, no VPU divide)
        r = pl.reciprocal(x, approx=True)
        return r * (2.0 - x * r)

    def expand(x):            # (N, D) -> (N, W): out[i, d*N+j] = x[i, d]  (MXU)
        return jnp.dot(x, S, preferred_element_type=jnp.float32)

    def transpose_bcast(x_i):  # (N, W) -> (N, W): out[i, d*N+j] = x[j, d] (MXU)
        return jnp.dot(ones_nn, x_i * diag, preferred_element_type=jnp.float32)

    # ---- pairwise overlap: one lane-dense pass, diagonal masked directly ----
    l_i, h_i = expand(l), expand(h)
    l_t, h_t = transpose_bcast(l_i), transpose_bcast(h_i)
    part1 = jnp.maximum(jnp.minimum(h_i, h_t) - jnp.maximum(l_i, l_t), 0.0)
    part1 = part1 * offdiag
    inv_gap = frecip(jnp.maximum(h_i - l_i, 1e-10))        # per-(i, d) gap
    loss_overlap = jnp.sum(part1 * inv_gap)

    # ---- embedding similarity vs omega (centered Frobenius norm) ----
    mean_l = jnp.sum(l, axis=0, keepdims=True) * (1.0 / N)               # (1,D)
    cen = l - mean_l
    pair_sumsq = (2.0 * N) * jnp.sum(cen * cen, axis=0, keepdims=True)   # (1,D)
    inv_nrm = jax.lax.rsqrt(jnp.maximum(pair_sumsq, 1e-20))  # == 1/max(||.||,1e-10)
    ls_i = expand(l * inv_nrm)               # fold positive scale before expand
    ls_t = transpose_bcast(ls_i)
    emb_sim = jnp.dot(jnp.abs(ls_i - ls_t), R,
                      preferred_element_type=jnp.float32)                # (N,N)
    diff_sim = omegaN - emb_sim
    loss_sim = jnp.sqrt(jnp.sum(diff_sim * diff_sim))

    # ---- exceed / extra / positive: fused (N, D) accumulator, one reduce ----
    embDiff = h - l
    exceed = (jnp.maximum((p_l + scr) - l, 0.0)
              + jnp.maximum(h - (p_h + scr), 0.0))                       # (N,D)
    lvl_range = (jnp.max(p_h, axis=1, keepdims=True)
                 - jnp.min(p_l, axis=1, keepdims=True))                  # (1,1)
    numerator = jnp.maximum(embDiff * frecip(lvl_range), 1e-10)
    extra = jnp.clip(jnp.abs(jnp.log(numerator * inv_lv)), -2.0, 1e5)
    positive = jnp.maximum(jnp.exp(-embDiff), 1e-10)
    small = 3.0 * exceed + 20.0 * extra + 6.0 * positive

    out_ref[0, 0] = 0.0011 * loss_sim + 12.0 * loss_overlap + jnp.sum(small)


# ----------------------------------------------------------------------------
# Wrapper: packs runtime tensors into one slab and calls the kernel.
# ----------------------------------------------------------------------------
def tree_loss(steps, children_l, children_h, parent_l, parent_h, leaves,
              omega_normed, single_circle_range):
    # `steps` only gated a host-side debug print in the PyTorch module.
    del steps
    N, D = children_l.shape
    W = N * D
    assert N % 8 == 0 and D <= 8 and W <= LANES

    f32 = jnp.float32
    # sublane-stacked, lane-0-aligned, 128-lane slab (few fused update-slices)
    slab = jnp.zeros((4 * N + 8, LANES), f32)
    slab = slab.at[0:N, 0:D].set(children_l.astype(f32))
    slab = slab.at[N:2 * N, 0:D].set(children_h.astype(f32))
    slab = slab.at[2 * N:3 * N, 0:N].set(omega_normed.astype(f32))
    slab = slab.at[3 * N:4 * N, 0:1].set(1.0 / leaves.reshape(N, 1).astype(f32))
    slab = slab.at[4 * N, 0:D].set(parent_l.reshape(D).astype(f32))
    slab = slab.at[4 * N + 1, 0:D].set(parent_h.reshape(D).astype(f32))

    consts = _build_consts(N, D)                    # pure constant, no runtime cost
    scr = jnp.full((1, 1), single_circle_range, dtype=f32)   # SMEM scalar

    kernel = functools.partial(tree_loss_kernel, N=N, D=D)
    out = pl.pallas_call(
        kernel,
        out_shape=jax.ShapeDtypeStruct((1, 1), jnp.float32),
        in_specs=[pl.BlockSpec(memory_space=pltpu.MemorySpace.SMEM),
                  pl.BlockSpec(memory_space=pltpu.MemorySpace.VMEM),
                  pl.BlockSpec(memory_space=pltpu.MemorySpace.VMEM)],
        out_specs=pl.BlockSpec(memory_space=pltpu.MemorySpace.SMEM),
    )(scr, slab, consts)
    return out[0, 0]


# ----------------------------------------------------------------------------
# Pure-JAX reference (mirrors the PyTorch forward literally) for validation.
# ----------------------------------------------------------------------------
def ref_loss(children_l, children_h, parent_l, parent_h, leaves,
             omega_normed, scr):
    l, h = children_l, children_h
    N, D = l.shape
    embDiff = h - l
    loss_exceed = (jnp.sum(jax.nn.relu((parent_l + scr) - l))
                   + jnp.sum(jax.nn.relu(h - (parent_h + scr))))
    l1 = jnp.tile(jnp.reshape(l.T, (N * D, 1)), (1, N))
    h1 = jnp.tile(jnp.reshape(h.T, (N * D, 1)), (1, N))
    l2 = jnp.repeat(l.T, N, axis=0)
    h2 = jnp.repeat(h.T, N, axis=0)
    max_l = jnp.maximum(l1, l2)
    min_h = jnp.minimum(h1, h2)
    filt = jnp.tile(1.0 - jnp.eye(N, dtype=jnp.float32), (D, 1))
    overlap = (min_h - max_l) * filt
    part1 = jnp.where(overlap > 0, overlap, 0.0)
    gap = jnp.maximum(jnp.reshape(embDiff.T, (N * D, 1)), 1e-10)
    loss_overlap = jnp.sum(part1 / gap)
    dmd = jnp.abs(l1 - l2).reshape(D, N, N)
    nrm = jnp.sqrt(jnp.sum(dmd * dmd, axis=(1, 2), keepdims=True))
    emb_sim = jnp.sum(dmd / jnp.maximum(nrm, 1e-10), axis=0)
    loss_sim = jnp.sqrt(jnp.sum((omega_normed - emb_sim) ** 2))
    level_range = jnp.max(parent_h) - jnp.min(parent_l)
    numerator = jnp.maximum(embDiff / level_range, 1e-10)
    div = numerator / leaves.reshape(N, 1)
    loss_extra = jnp.sum(jnp.clip(jnp.abs(jnp.log(div)), -2.0, 1e5))
    loss_positive = jnp.sum(jnp.maximum(jnp.exp(-embDiff), 1e-10))
    return (0.0011 * loss_sim + 20.0 * loss_extra + 3.0 * loss_exceed
            + 12.0 * loss_overlap + 6.0 * loss_positive)


# ----------------------------------------------------------------------------
# Deterministic parameter / input construction (mirrors __init__).
# ----------------------------------------------------------------------------
def build_inputs(key, nodes_num, single_dim, omega_feat, single_circle_range):
    N, D = nodes_num, single_dim
    k_omega, k_res, k_ce = jax.random.split(key, 3)

    omega = jax.random.normal(k_omega, (N, omega_feat), dtype=jnp.float32)
    sq = jnp.sum(omega * omega, axis=1, keepdims=True)
    omega_sim = jnp.maximum(-2.0 * omega @ omega.T + sq + sq.T, 1e-10)
    omega_normed = omega_sim / jnp.maximum(jnp.sqrt(jnp.sum(omega_sim ** 2)), 1e-10)

    base = jax.random.uniform(k_res, (5, D), minval=0.1, maxval=1.0,
                              dtype=jnp.float32)
    res = jnp.concatenate([-base, base], axis=1)   # (5, 2D): rows = [low | high]
    parent_emb = res[2]                            # parent index = 2
    parent_l, parent_h = parent_emb[:D], parent_emb[D:]

    leaves_cnt = jnp.arange(1, N + 1, dtype=jnp.float32)
    leaves = leaves_cnt / jnp.sum(leaves_cnt)      # (N,)

    a = single_circle_range + jnp.min(parent_l)
    b = single_circle_range + jnp.max(parent_h)
    ce = jax.random.uniform(k_ce, (N, 2 * D), minval=a, maxval=b,
                            dtype=jnp.float32)
    l0, h0 = ce[:, :D], ce[:, D:]
    l1 = jnp.where(l0 < h0, l0, h0)                # exactly the PyTorch init logic
    h1 = jnp.where(l1 > h0, l1, h0)
    return l1, h1, parent_l, parent_h, leaves, omega_normed


if __name__ == "__main__":
    # small shapes: nodes_num=8 children, single_dim=4 (hidden_dim=8),
    # omega feature dim=16, single_circle_range=2.0
    NODES_NUM = 8
    SINGLE_DIM = 4
    OMEGA_FEAT = 16
    SINGLE_CIRCLE_RANGE = 2.0

    key = jax.random.PRNGKey(0)
    (children_l, children_h, parent_l, parent_h,
     leaves, omega_normed) = build_inputs(key, NODES_NUM, SINGLE_DIM,
                                          OMEGA_FEAT, SINGLE_CIRCLE_RANGE)

    steps = 0
    loss_fn = jax.jit(tree_loss)
    loss = loss_fn(steps, children_l, children_h, parent_l, parent_h,
                   leaves, omega_normed, SINGLE_CIRCLE_RANGE)
    loss = jax.block_until_ready(loss)

    ref = float(ref_loss(children_l, children_h, parent_l, parent_h,
                         leaves, omega_normed, SINGLE_CIRCLE_RANGE))
    got = float(loss)
    assert math.isfinite(got), f"non-finite loss: {got}"
    assert abs(got - ref) <= 1e-3 * abs(ref) + 1e-2, (got, ref)

    # TODO(synk): the `steps % 1000 == 0` host-side debug printing of the
    # individual loss terms is intentionally omitted (pure logging).
    print("KERNEL_OK")
</pallas_src>

<mosaic_0001>
module attributes {stable_mosaic.version = 11 : i64} {
  func.func @tree_loss_kernel(%arg0: memref<1x1xf32, #tpu.memory_space<smem>>, %arg1: memref<40x128xf32, #tpu.memory_space<vmem>>, %arg2: memref<48x128xf32, #tpu.memory_space<vmem>>, %arg3: memref<1x1xf32, #tpu.memory_space<smem>>) attributes {dimension_semantics = [], scalar_prefetch = 0 : i64, scratch_operands = 0 : i64, tpu.core_type = #tpu.core_type<tc>} {
    %c0 = arith.constant 0 : index
    %c0_0 = arith.constant 0 : index
    %0 = memref.load %arg0[%c0, %c0_0] : memref<1x1xf32, #tpu.memory_space<smem>>
    %c0_1 = arith.constant 0 : index
    %c0_2 = arith.constant 0 : index
    %1 = vector.load %arg1[%c0_1, %c0_2] : memref<40x128xf32, #tpu.memory_space<vmem>>, vector<8x4xf32>
    %c8 = arith.constant 8 : index
    %c0_3 = arith.constant 0 : index
    %2 = vector.load %arg1[%c8, %c0_3] : memref<40x128xf32, #tpu.memory_space<vmem>>, vector<8x4xf32>
    %c16 = arith.constant 16 : index
    %c0_4 = arith.constant 0 : index
    %3 = vector.load %arg1[%c16, %c0_4] : memref<40x128xf32, #tpu.memory_space<vmem>>, vector<8x8xf32>
    %c24 = arith.constant 24 : index
    %c0_5 = arith.constant 0 : index
    %4 = vector.load %arg1[%c24, %c0_5] : memref<40x128xf32, #tpu.memory_space<vmem>>, vector<8x1xf32>
    %c32 = arith.constant 32 : index
    %c0_6 = arith.constant 0 : index
    %5 = vector.load %arg1[%c32, %c0_6] : memref<40x128xf32, #tpu.memory_space<vmem>>, vector<2x4xf32>
    %6 = vector.extract_strided_slice %5 {offsets = [0, 0], sizes = [1, 4], strides = [1, 1]} : vector<2x4xf32> to vector<1x4xf32>
    %7 = vector.extract_strided_slice %5 {offsets = [1, 0], sizes = [1, 4], strides = [1, 1]} : vector<2x4xf32> to vector<1x4xf32>
    %c0_7 = arith.constant 0 : index
    %c0_8 = arith.constant 0 : index
    %8 = vector.load %arg2[%c0_7, %c0_8] : memref<48x128xf32, #tpu.memory_space<vmem>>, vector<4x32xf32>
    %c8_9 = arith.constant 8 : index
    %c0_10 = arith.constant 0 : index
    %9 = vector.load %arg2[%c8_9, %c0_10] : memref<48x128xf32, #tpu.memory_space<vmem>>, vector<8x32xf32>
    %c16_11 = arith.constant 16 : index
    %c0_12 = arith.constant 0 : index
    %10 = vector.load %arg2[%c16_11, %c0_12] : memref<48x128xf32, #tpu.memory_space<vmem>>, vector<32x8xf32>
    %cst = arith.constant 1.000000e+00 : f32
    %11 = vector.broadcast %cst : f32 to vector<8x8xf32>
    %cst_13 = arith.constant 1.000000e+00 : f32
    %12 = vector.broadcast %cst_13 : f32 to vector<8x32xf32>
    %13 = arith.subf %12, %9 : vector<8x32xf32>
    %cst_14 = arith.constant dense<0.000000e+00> : vector<8x32xf32>
    %14 = tpu.matmul %1, %8, %cst_14 {dimension_numbers = #tpu.dot_dimension_numbers<[1], [0], [0], [1], [0, 0, 1, 1], [], []>} : vector<8x4xf32>, vector<4x32xf32>, vector<8x32xf32> -> vector<8x32xf32>
    %cst_15 = arith.constant dense<0.000000e+00> : vector<8x32xf32>
    %15 = tpu.matmul %2, %8, %cst_15 {dimension_numbers = #tpu.dot_dimension_numbers<[1], [0], [0], [1], [0, 0, 1, 1], [], []>} : vector<8x4xf32>, vector<4x32xf32>, vector<8x32xf32> -> vector<8x32xf32>
    %16 = arith.mulf %14, %9 : vector<8x32xf32>
    %cst_16 = arith.constant dense<0.000000e+00> : vector<8x32xf32>
    %17 = tpu.matmul %11, %16, %cst_16 {dimension_numbers = #tpu.dot_dimension_numbers<[1], [0], [0], [1], [0, 0, 1, 1], [], []>} : vector<8x8xf32>, vector<8x32xf32>, vector<8x32xf32> -> vector<8x32xf32>
    %18 = arith.mulf %15, %9 : vector<8x32xf32>
    %cst_17 = arith.constant dense<0.000000e+00> : vector<8x32xf32>
    %19 = tpu.matmul %11, %18, %cst_17 {dimension_numbers = #tpu.dot_dimension_numbers<[1], [0], [0], [1], [0, 0, 1, 1], [], []>} : vector<8x8xf32>, vector<8x32xf32>, vector<8x32xf32> -> vector<8x32xf32>
    %20 = arith.minimumf %15, %19 : vector<8x32xf32>
    %21 = arith.maximumf %14, %17 : vector<8x32xf32>
    %22 = arith.subf %20, %21 : vector<8x32xf32>
    %cst_18 = arith.constant 0.000000e+00 : f32
    %23 = vector.broadcast %cst_18 : f32 to vector<8x32xf32>
    %24 = arith.maximumf %22, %23 : vector<8x32xf32>
    %25 = arith.mulf %24, %13 : vector<8x32xf32>
    %26 = arith.subf %15, %14 : vector<8x32xf32>
    %cst_19 = arith.constant 1.000000e-10 : f32
    %27 = vector.broadcast %cst_19 : f32 to vector<8x32xf32>
    %28 = arith.maximumf %26, %27 : vector<8x32xf32>
    %29 = tpu.reciprocal %28 {approx = true} : vector<8x32xf32> -> vector<8x32xf32>
    %30 = arith.mulf %28, %29 : vector<8x32xf32>
    %cst_20 = arith.constant 2.000000e+00 : f32
    %31 = vector.broadcast %cst_20 : f32 to vector<8x32xf32>
    %32 = arith.subf %31, %30 : vector<8x32xf32>
    %33 = arith.mulf %29, %32 : vector<8x32xf32>
    %34 = arith.mulf %25, %33 : vector<8x32xf32>
    %35 = vector.shape_cast %34 : vector<8x32xf32> to vector<1x8x32xf32>
    %cst_21 = arith.constant dense<0.000000e+00> : vector<1xf32>
    %36 = vector.multi_reduction <add>, %35, %cst_21 [1, 2] : vector<1x8x32xf32> to vector<1xf32>
    %37 = vector.shape_cast %36 : vector<1xf32> to vector<1x1x1xf32>
    %38 = vector.extract %37[0, 0, 0] : f32 from vector<1x1x1xf32>
    %cst_22 = arith.constant dense<0.000000e+00> : vector<4xf32>
    %39 = vector.multi_reduction <add>, %1, %cst_22 [0] : vector<8x4xf32> to vector<4xf32>
    %40 = vector.shape_cast %39 : vector<4xf32> to vector<1x4xf32>
    %cst_23 = arith.constant 1.250000e-01 : f32
    %41 = vector.broadcast %cst_23 : f32 to vector<1x4xf32>
    %42 = arith.mulf %40, %41 : vector<1x4xf32>
    %43 = vector.broadcast %42 : vector<1x4xf32> to vector<8x4xf32>
    %44 = arith.subf %1, %43 : vector<8x4xf32>
    %45 = arith.mulf %44, %44 : vector<8x4xf32>
    %cst_24 = arith.constant dense<0.000000e+00> : vector<4xf32>
    %46 = vector.multi_reduction <add>, %45, %cst_24 [0] : vector<8x4xf32> to vector<4xf32>
    %47 = vector.shape_cast %46 : vector<4xf32> to vector<1x4xf32>
    %cst_25 = arith.constant 1.600000e+01 : f32
    %48 = vector.broadcast %cst_25 : f32 to vector<1x4xf32>
    %49 = arith.mulf %48, %47 : vector<1x4xf32>
    %cst_26 = arith.constant 9.99999968E-21 : f32
    %50 = vector.broadcast %cst_26 : f32 to vector<1x4xf32>
    %51 = arith.maximumf %49, %50 : vector<1x4xf32>
    %52 = math.rsqrt %51 : vector<1x4xf32>
    %53 = vector.broadcast %52 : vector<1x4xf32> to vector<8x4xf32>
    %54 = arith.mulf %1, %53 : vector<8x4xf32>
    %cst_27 = arith.constant dense<0.000000e+00> : vector<8x32xf32>
    %55 = tpu.matmul %54, %8, %cst_27 {dimension_numbers = #tpu.dot_dimension_numbers<[1], [0], [0], [1], [0, 0, 1, 1], [], []>} : vector<8x4xf32>, vector<4x32xf32>, vector<8x32xf32> -> vector<8x32xf32>
    %56 = arith.mulf %55, %9 : vector<8x32xf32>
    %cst_28 = arith.constant dense<0.000000e+00> : vector<8x32xf32>
    %57 = tpu.matmul %11, %56, %cst_28 {dimension_numbers = #tpu.dot_dimension_numbers<[1], [0], [0], [1], [0, 0, 1, 1], [], []>} : vector<8x8xf32>, vector<8x32xf32>, vector<8x32xf32> -> vector<8x32xf32>
    %58 = arith.subf %55, %57 : vector<8x32xf32>
    %59 = math.absf %58 : vector<8x32xf32>
    %cst_29 = arith.constant dense<0.000000e+00> : vector<8x8xf32>
    %60 = tpu.matmul %59, %10, %cst_29 {dimension_numbers = #tpu.dot_dimension_numbers<[1], [0], [0], [1], [0, 0, 1, 1], [], []>} : vector<8x32xf32>, vector<32x8xf32>, vector<8x8xf32> -> vector<8x8xf32>
    %61 = arith.subf %3, %60 : vector<8x8xf32>
    %62 = arith.mulf %61, %61 : vector<8x8xf32>
    %63 = vector.shape_cast %62 : vector<8x8xf32> to vector<1x8x8xf32>
    %cst_30 = arith.constant dense<0.000000e+00> : vector<1xf32>
    %64 = vector.multi_reduction <add>, %63, %cst_30 [1, 2] : vector<1x8x8xf32> to vector<1xf32>
    %65 = vector.shape_cast %64 : vector<1xf32> to vector<1x1x1xf32>
    %66 = vector.extract %65[0, 0, 0] : f32 from vector<1x1x1xf32>
    %67 = math.sqrt %66 : f32
    %68 = arith.subf %2, %1 : vector<8x4xf32>
    %69 = vector.broadcast %0 : f32 to vector<1x4xf32>
    %70 = arith.addf %6, %69 : vector<1x4xf32>
    %71 = vector.broadcast %70 : vector<1x4xf32> to vector<8x4xf32>
    %72 = arith.subf %71, %1 : vector<8x4xf32>
    %cst_31 = arith.constant 0.000000e+00 : f32
    %73 = vector.broadcast %cst_31 : f32 to vector<8x4xf32>
    %74 = arith.maximumf %72, %73 : vector<8x4xf32>
    %75 = vector.broadcast %0 : f32 to vector<1x4xf32>
    %76 = arith.addf %7, %75 : vector<1x4xf32>
    %77 = vector.broadcast %76 : vector<1x4xf32> to vector<8x4xf32>
    %78 = arith.subf %2, %77 : vector<8x4xf32>
    %cst_32 = arith.constant 0.000000e+00 : f32
    %79 = vector.broadcast %cst_32 : f32 to vector<8x4xf32>
    %80 = arith.maximumf %78, %79 : vector<8x4xf32>
    %81 = arith.addf %74, %80 : vector<8x4xf32>
    %cst_33 = arith.constant dense<0xFF800000> : vector<1xf32>
    %82 = vector.multi_reduction <maximumf>, %7, %cst_33 [1] : vector<1x4xf32> to vector<1xf32>
    %83 = vector.shape_cast %82 : vector<1xf32> to vector<1x1xf32>
    %cst_34 = arith.constant dense<0x7F800000> : vector<1xf32>
    %84 = vector.multi_reduction <minimumf>, %6, %cst_34 [1] : vector<1x4xf32> to vector<1xf32>
    %85 = vector.shape_cast %84 : vector<1xf32> to vector<1x1xf32>
    %86 = arith.subf %83, %85 : vector<1x1xf32>
    %87 = tpu.reciprocal %86 {approx = true} : vector<1x1xf32> -> vector<1x1xf32>
    %88 = arith.mulf %86, %87 : vector<1x1xf32>
    %cst_35 = arith.constant 2.000000e+00 : f32
    %89 = vector.broadcast %cst_35 : f32 to vector<1x1xf32>
    %90 = arith.subf %89, %88 : vector<1x1xf32>
    %91 = arith.mulf %87, %90 : vector<1x1xf32>
    %92 = vector.broadcast %91 : vector<1x1xf32> to vector<8x4xf32>
    %93 = arith.mulf %68, %92 : vector<8x4xf32>
    %cst_36 = arith.constant 1.000000e-10 : f32
    %94 = vector.broadcast %cst_36 : f32 to vector<8x4xf32>
    %95 = arith.maximumf %93, %94 : vector<8x4xf32>
    %96 = vector.broadcast %4 : vector<8x1xf32> to vector<8x4xf32>
    %97 = arith.mulf %95, %96 : vector<8x4xf32>
    %98 = math.log %97 : vector<8x4xf32>
    %99 = math.absf %98 : vector<8x4xf32>
    %cst_37 = arith.constant -2.000000e+00 : f32
    %cst_38 = arith.constant 1.000000e+05 : f32
    %100 = vector.broadcast %cst_37 : f32 to vector<8x4xf32>
    %101 = arith.maximumf %100, %99 : vector<8x4xf32>
    %102 = vector.broadcast %cst_38 : f32 to vector<8x4xf32>
    %103 = arith.minimumf %102, %101 : vector<8x4xf32>
    %cst_39 = arith.constant 0.000000e+00 : f32
    %104 = vector.broadcast %cst_39 : f32 to vector<8x4xf32>
    %105 = arith.subf %104, %68 : vector<8x4xf32>
    %106 = math.exp %105 : vector<8x4xf32>
    %cst_40 = arith.constant 1.000000e-10 : f32
    %107 = vector.broadcast %cst_40 : f32 to vector<8x4xf32>
    %108 = arith.maximumf %106, %107 : vector<8x4xf32>
    %cst_41 = arith.constant 3.000000e+00 : f32
    %109 = vector.broadcast %cst_41 : f32 to vector<8x4xf32>
    %110 = arith.mulf %109, %81 : vector<8x4xf32>
    %cst_42 = arith.constant 2.000000e+01 : f32
    %111 = vector.broadcast %cst_42 : f32 to vector<8x4xf32>
    %112 = arith.mulf %111, %103 : vector<8x4xf32>
    %113 = arith.addf %110, %112 : vector<8x4xf32>
    %cst_43 = arith.constant 6.000000e+00 : f32
    %114 = vector.broadcast %cst_43 : f32 to vector<8x4xf32>
    %115 = arith.mulf %114, %108 : vector<8x4xf32>
    %116 = arith.addf %113, %115 : vector<8x4xf32>
    %cst_44 = arith.constant 1.100000e-03 : f32
    %117 = arith.mulf %cst_44, %67 : f32
    %cst_45 = arith.constant 1.200000e+01 : f32
    %118 = arith.mulf %cst_45, %38 : f32
    %119 = arith.addf %117, %118 : f32
    %120 = vector.shape_cast %116 : vector<8x4xf32> to vector<1x8x4xf32>
    %cst_46 = arith.constant dense<0.000000e+00> : vector<1xf32>
    %121 = vector.multi_reduction <add>, %120, %cst_46 [1, 2] : vector<1x8x4xf32> to vector<1xf32>
    %122 = vector.shape_cast %121 : vector<1xf32> to vector<1x1x1xf32>
    %123 = vector.extract %122[0, 0, 0] : f32 from vector<1x1x1xf32>
    %124 = arith.addf %119, %123 : f32
    %c0_47 = arith.constant 0 : index
    %c0_48 = arith.constant 0 : index
    %125 = memref.load %arg3[%c0_47, %c0_48] : memref<1x1xf32, #tpu.memory_space<smem>>
    memref.store %124, %arg3[%c0_47, %c0_48] : memref<1x1xf32, #tpu.memory_space<smem>>
    return
  }
}

</mosaic_0001>

<llo_original>
// kernel: tree_loss.1
$region0: #{tree_loss.1}
  #allocation0 [shape = 'u32[]', space=smem, size = 0x4, offset = 0x4, fixed_abs, tag = 'smem constant byte address 0x4 - core index']
  #allocation1 [shape = 'u32[144,128]{1,0:T(1,128)}', space=vmem, size = 0x12000, scoped, tag = 'internal scratch']
  #allocation2 [shape = 'f32[1,1]{1,0:T(1,128)S(6)}', space=smem, size = 0x200, scoped, tag = 'scoped memory for tree_loss.1']
  %s0 = inlined_call_operand.<no memory space> [shape: f32[1,1], index: 0, kind: input, shape index: {}]
  %s1 = inlined_call_operand.vmem [shape: f32[40,128], index: 1, kind: input, shape index: {}]
  %s2 = inlined_call_operand.vmem [shape: f32[48,128], index: 2, kind: input, shape index: {}]
  %s3 = inlined_call_operand.hbm [shape: f32[1,1], index: 3, kind: output, shape index: {}]
  %s4 = sld [smem:[#allocation0]]
  $region22: #{tree_loss.1} parent=0
    _
  %s6 = ssub.s32 1, %s4
  %s7 = scalar_select 0, %s6, %s4
  %8 = sst [smem:[#allocation2]] %s0
  $region1: #{tree_loss.1} parent=0
    #allocation3 [shape = 'u8[512]{0}', space=smem, size = 0x200, scoped, tag = 'output window, operand 0, single buffered']
    #allocation4 [shape = 's32[1]{0}', space=sflag, size = 0x4, scoped, tag = 'scoped memory for tree_loss.1']
    %9 = vsyncpa [#allocation4], 0
    // Predicated region
    $region2: #{tree_loss.1} parent=1 // pred_check
      _
    $region3: #{tree_loss.1} parent=1 // pred_check_branch
      %11 = sbr.rel (0) target = $region5
    $region4: #{tree_loss.1} parent=1 // pred_region
      _
    $region5: #{tree_loss.1} parent=1 // pred_fallthru
      _
    // Predicated region
    $region6: #{tree_loss.1} parent=1 // pred_check
      _
    $region7: #{tree_loss.1} parent=1 // pred_check_branch
      %13 = sbr.rel (0) target = $region9
    $region8: #{tree_loss.1} parent=1 // pred_region
      _
    $region9: #{tree_loss.1} parent=1 // pred_fallthru
      _
    // Predicated region
    $region10: #{tree_loss.1} parent=1 // pred_check
      _
    $region11: #{tree_loss.1} parent=1 // pred_check_branch
      %15 = sbr.rel (0) target = $region13
    $region12: #{tree_loss.1} parent=1 // pred_region
      _
    $region13: #{tree_loss.1} parent=1 // pred_fallthru
      _
    %s16 = sld [smem:[#allocation2]]
    %v17 = vld [vmem:[%s1] sm:$0xff]
    %v18 = vld [vmem:[%s1 + $0x8] sm:$0xff]
    %v19 = vld [vmem:[%s1 + $0x10] sm:$0xff]
    %v20 = vld [vmem:[%s1 + $0x18] sm:$0xff]
    %v21 = vld [vmem:[%s1 + $0x20] sm:$0x3]
    %v22 = vld [vmem:[%s2] sm:$0xf]
    %v23 = vld [vmem:[%s2 + $0x8] sm:$0xff]
    %v24 = vld [vmem:[%s2 + $0x10] sm:$0xff]
    %v25 = vld [vmem:[%s2 + $0x18] sm:$0xff]
    %v26 = vld [vmem:[%s2 + $0x20] sm:$0xff]
    %v27 = vld [vmem:[%s2 + $0x28] sm:$0xff]
    %v28 = vsub.f32 1.0, %v23
    %vm29 = vcmask 31744
    %v31 = vsel %vm29, %v17, 0
    %vm33 = vcmask 1043456
    %v35 = vsel %vm33, %v22, 0
    %37 = vmatprep.subr.mxu0 0.0
    %38 = vmatpush1.msra.mxu0 0.0
    %39 = vmatprep.subr.mxu0 0.0
    %40 = vmatpush1.msra.mxu0 0.0
    %41 = vmatprep.subr.mxu0 0.0
    %42 = vmatpush1.msra.mxu0 0.0
    %43 = vmatprep.subr.mxu0 0.0
    %44 = vmatpush1.msra.mxu0 0.0
    %45 = vmatprep.subr.mxu0 0.0
    %46 = vmatpush1.msra.mxu0 0.0
    %47 = vmatprep.subr.mxu0 0.0
    %48 = vmatpush1.msra.mxu0 0.0
    %49 = vmatprep.subr.mxu0 0.0
    %50 = vmatpush1.msra.mxu0 0.0
    %51 = vmatprep.subr.mxu0 0.0
    %52 = vmatpush1.msra.mxu0 0.0
    %53 = vmatprep.subr.mxu0 0.0
    %54 = vmatpush1.msra.mxu0 0.0
    %55 = vmatprep.subr.mxu0 0.0
    %56 = vmatpush1.msra.mxu0 0.0
    %57 = vmatprep.subr.mxu0 0.0
    %58 = vmatpush1.msra.mxu0 0.0
    %59 = vmatprep.subr.mxu0 0.0
    %60 = vmatpush1.msra.mxu0 0.0
    %61 = vmatprep.subr.mxu0 0.0
    %62 = vmatpush1.msra.mxu0 0.0
    %63 = vmatprep.subr.mxu0 0.0
    %64 = vmatpush1.msra.mxu0 0.0
    %65 = vmatprep.subr.mxu0 0.0
    %66 = vmatpush1.msra.mxu0 0.0
    %67 = vmatprep.subr.mxu0 0.0
    %68 = vmatpush1.msra.mxu0 %v35
    %69 = vmatprep.subr.mxu0 0.0
    %70 = vmatpush2.msra.mxu0 0.0
    %71 = vmatprep.subr.mxu0 0.0
    %72 = vmatpush2.msra.mxu0 0.0
    %73 = vmatprep.subr.mxu0 0.0
    %74 = vmatpush2.msra.mxu0 0.0
    %75 = vmatprep.subr.mxu0 0.0
    %76 = vmatpush2.msra.mxu0 0.0
    %77 = vmatprep.subr.mxu0 0.0
    %78 = vmatpush2.msra.mxu0 0.0
    %79 = vmatprep.subr.mxu0 0.0
    %80 = vmatpush2.msra.mxu0 0.0
    %81 = vmatprep.subr.mxu0 0.0
    %82 = vmatpush2.msra.mxu0 0.0
    %83 = vmatprep.subr.mxu0 0.0
    %84 = vmatpush2.msra.mxu0 0.0
    %85 = vmatprep.subr.mxu0 0.0
    %86 = vmatpush2.msra.mxu0 0.0
    %87 = vmatprep.subr.mxu0 0.0
    %88 = vmatpush2.msra.mxu0 0.0
    %89 = vmatprep.subr.mxu0 0.0
    %90 = vmatpush2.msra.mxu0 0.0
    %91 = vmatprep.subr.mxu0 0.0
    %92 = vmatpush2.msra.mxu0 0.0
    %93 = vmatprep.subr.mxu0 0.0
    %94 = vmatpush2.msra.mxu0 0.0
    %95 = vmatprep.subr.mxu0 0.0
    %96 = vmatpush2.msra.mxu0 0.0
    %97 = vmatprep.subr.mxu0 0.0
    %98 = vmatpush2.msra.mxu0 0.0
    %99 = vmatprep.subr.mxu0 0.0
    %100 = vmatpush2.msra.mxu0 0.0
    %101 = vmatprep.mubr.f32.mxu0 0.0
    %102 = vmatmul.mubr.f32.gmra.mxu0 %v31
    %v103 = vpop.f32.mrf.mxu0
    %v104 = vadd.f32 0.0, %v103
    %v105 = vpop.f32.mrf.mxu0
    %106 = vdwg.mxu0
    %v108 = vsel %vm29, %v18, 0
    %110 = vmatprep.subr.mxu0 0.0
    %111 = vmatpush1.msra.mxu0 0.0
    %112 = vmatprep.subr.mxu0 0.0
    %113 = vmatpush1.msra.mxu0 0.0
    %114 = vmatprep.subr.mxu0 0.0
    %115 = vmatpush1.msra.mxu0 0.0
    %116 = vmatprep.subr.mxu0 0.0
    %117 = vmatpush1.msra.mxu0 0.0
    %118 = vmatprep.subr.mxu0 0.0
    %119 = vmatpush1.msra.mxu0 0.0
    %120 = vmatprep.subr.mxu0 0.0
    %121 = vmatpush1.msra.mxu0 0.0
    %122 = vmatprep.subr.mxu0 0.0
    %123 = vmatpush1.msra.mxu0 0.0
    %124 = vmatprep.subr.mxu0 0.0
    %125 = vmatpush1.msra.mxu0 0.0
    %126 = vmatprep.subr.mxu0 0.0
    %127 = vmatpush1.msra.mxu0 0.0
    %128 = vmatprep.subr.mxu0 0.0
    %129 = vmatpush1.msra.mxu0 0.0
    %130 = vmatprep.subr.mxu0 0.0
    %131 = vmatpush1.msra.mxu0 0.0
    %132 = vmatprep.subr.mxu0 0.0
    %133 = vmatpush1.msra.mxu0 0.0
    %134 = vmatprep.subr.mxu0 0.0
    %135 = vmatpush1.msra.mxu0 0.0
    %136 = vmatprep.subr.mxu0 0.0
    %137 = vmatpush1.msra.mxu0 0.0
    %138 = vmatprep.subr.mxu0 0.0
    %139 = vmatpush1.msra.mxu0 0.0
    %140 = vmatprep.subr.mxu0 0.0
    %141 = vmatpush1.msra.mxu0 %v35
    %142 = vmatprep.subr.mxu0 0.0
    %143 = vmatpush2.msra.mxu0 0.0
    %144 = vmatprep.subr.mxu0 0.0
    %145 = vmatpush2.msra.mxu0 0.0
    %146 = vmatprep.subr.mxu0 0.0
    %147 = vmatpush2.msra.mxu0 0.0
    %148 = vmatprep.subr.mxu0 0.0
    %149 = vmatpush2.msra.mxu0 0.0
    %150 = vmatprep.subr.mxu0 0.0
    %151 = vmatpush2.msra.mxu0 0.0
    %152 = vmatprep.subr.mxu0 0.0
    %153 = vmatpush2.msra.mxu0 0.0
    %154 = vmatprep.subr.mxu0 0.0
    %155 = vmatpush2.msra.mxu0 0.0
    %156 = vmatprep.subr.mxu0 0.0
    %157 = vmatpush2.msra.mxu0 0.0
    %158 = vmatprep.subr.mxu0 0.0
    %159 = vmatpush2.msra.mxu0 0.0
    %160 = vmatprep.subr.mxu0 0.0
    %161 = vmatpush2.msra.mxu0 0.0
    %162 = vmatprep.subr.mxu0 0.0
    %163 = vmatpush2.msra.mxu0 0.0
    %164 = vmatprep.subr.mxu0 0.0
    %165 = vmatpush2.msra.mxu0 0.0
    %166 = vmatprep.subr.mxu0 0.0
    %167 = vmatpush2.msra.mxu0 0.0
    %168 = vmatprep.subr.mxu0 0.0
    %169 = vmatpush2.msra.mxu0 0.0
    %170 = vmatprep.subr.mxu0 0.0
    %171 = vmatpush2.msra.mxu0 0.0
    %172 = vmatprep.subr.mxu0 0.0
    %173 = vmatpush2.msra.mxu0 0.0
    %174 = vmatprep.mubr.f32.mxu0 0.0
    %175 = vmatmul.mubr.f32.gmra.mxu0 %v108
    %v176 = vpop.f32.mrf.mxu0
    %v177 = vadd.f32 0.0, %v176
    %v178 = vpop.f32.mrf.mxu0
    %179 = vdwg.mxu0
    %v180 = vmul.f32 %v104, %v23
    %vm181 = vcmask 64512
    %v183 = vsel %vm181, 1.0, 0
    %185 = vmatprep.subr.mxu0 0.0
    %186 = vmatpush1.msra.mxu0 0.0
    %187 = vmatprep.subr.mxu0 0.0
    %188 = vmatpush1.msra.mxu0 0.0
    %189 = vmatprep.subr.mxu0 0.0
    %190 = vmatpush1.msra.mxu0 0.0
    %191 = vmatprep.subr.mxu0 0.0
    %192 = vmatpush1.msra.mxu0 0.0
    %193 = vmatprep.subr.mxu0 0.0
    %194 = vmatpush1.msra.mxu0 0.0
    %195 = vmatprep.subr.mxu0 0.0
    %196 = vmatpush1.msra.mxu0 0.0
    %197 = vmatprep.subr.mxu0 0.0
    %198 = vmatpush1.msra.mxu0 0.0
    %199 = vmatprep.subr.mxu0 0.0
    %200 = vmatpush1.msra.mxu0 0.0
    %201 = vmatprep.subr.mxu0 0.0
    %202 = vmatpush1.msra.mxu0 0.0
    %203 = vmatprep.subr.mxu0 0.0
    %204 = vmatpush1.msra.mxu0 0.0
    %205 = vmatprep.subr.mxu0 0.0
    %206 = vmatpush1.msra.mxu0 0.0
    %207 = vmatprep.subr.mxu0 0.0
    %208 = vmatpush1.msra.mxu0 0.0
    %209 = vmatprep.subr.mxu0 0.0
    %210 = vmatpush1.msra.mxu0 0.0
    %211 = vmatprep.subr.mxu0 0.0
    %212 = vmatpush1.msra.mxu0 0.0
    %213 = vmatprep.subr.mxu0 0.0
    %214 = vmatpush1.msra.mxu0 0.0
    %215 = vmatprep.subr.mxu0 0.0
    %216 = vmatpush1.msra.mxu0 %v180
    %217 = vmatprep.subr.mxu0 0.0
    %218 = vmatpush2.msra.mxu0 0.0
    %219 = vmatprep.subr.mxu0 0.0
    %220 = vmatpush2.msra.mxu0 0.0
    %221 = vmatprep.subr.mxu0 0.0
    %222 = vmatpush2.msra.mxu0 0.0
    %223 = vmatprep.subr.mxu0 0.0
    %224 = vmatpush2.msra.mxu0 0.0
    %225 = vmatprep.subr.mxu0 0.0
    %226 = vmatpush2.msra.mxu0 0.0
    %227 = vmatprep.subr.mxu0 0.0
    %228 = vmatpush2.msra.mxu0 0.0
    %229 = vmatprep.subr.mxu0 0.0
    %230 = vmatpush2.msra.mxu0 0.0
    %231 = vmatprep.subr.mxu0 0.0
    %232 = vmatpush2.msra.mxu0 0.0
    %233 = vmatprep.subr.mxu0 0.0
    %234 = vmatpush2.msra.mxu0 0.0
    %235 = vmatprep.subr.mxu0 0.0
    %236 = vmatpush2.msra.mxu0 0.0
    %237 = vmatprep.subr.mxu0 0.0
    %238 = vmatpush2.msra.mxu0 0.0
    %239 = vmatprep.subr.mxu0 0.0
    %240 = vmatpush2.msra.mxu0 0.0
    %241 = vmatprep.subr.mxu0 0.0
    %242 = vmatpush2.msra.mxu0 0.0
    %243 = vmatprep.subr.mxu0 0.0
    %244 = vmatpush2.msra.mxu0 0.0
    %245 = vmatprep.subr.mxu0 0.0
    %246 = vmatpush2.msra.mxu0 0.0
    %247 = vmatprep.subr.mxu0 0.0
    %248 = vmatpush2.msra.mxu0 0.0
    %249 = vmatprep.mubr.f32.mxu0 0.0
    %250 = vmatmul.mubr.f32.gmra.mxu0 %v183
    %v251 = vpop.f32.mrf.mxu0
    %v252 = vadd.f32 0.0, %v251
    %v253 = vpop.f32.mrf.mxu0
    %254 = vdwg.mxu0
    %v255 = vmul.f32 %v177, %v23
    %256 = vmatprep.subr.mxu0 0.0
    %257 = vmatpush1.msra.mxu0 0.0
    %258 = vmatprep.subr.mxu0 0.0
    %259 = vmatpush1.msra.mxu0 0.0
    %260 = vmatprep.subr.mxu0 0.0
    %261 = vmatpush1.msra.mxu0 0.0
    %262 = vmatprep.subr.mxu0 0.0
    %263 = vmatpush1.msra.mxu0 0.0
    %264 = vmatprep.subr.mxu0 0.0
    %265 = vmatpush1.msra.mxu0 0.0
    %266 = vmatprep.subr.mxu0 0.0
    %267 = vmatpush1.msra.mxu0 0.0
    %268 = vmatprep.subr.mxu0 0.0
    %269 = vmatpush1.msra.mxu0 0.0
    %270 = vmatprep.subr.mxu0 0.0
    %271 = vmatpush1.msra.mxu0 0.0
    %272 = vmatprep.subr.mxu0 0.0
    %273 = vmatpush1.msra.mxu0 0.0
    %274 = vmatprep.subr.mxu0 0.0
    %275 = vmatpush1.msra.mxu0 0.0
    %276 = vmatprep.subr.mxu0 0.0
    %277 = vmatpush1.msra.mxu0 0.0
    %278 = vmatprep.subr.mxu0 0.0
    %279 = vmatpush1.msra.mxu0 0.0
    %280 = vmatprep.subr.mxu0 0.0
    %281 = vmatpush1.msra.mxu0 0.0
    %282 = vmatprep.subr.mxu0 0.0
    %283 = vmatpush1.msra.mxu0 0.0
    %284 = vmatprep.subr.mxu0 0.0
    %285 = vmatpush1.msra.mxu0 0.0
    %286 = vmatprep.subr.mxu0 0.0
    %287 = vmatpush1.msra.mxu0 %v255
    %288 = vmatprep.subr.mxu0 0.0
    %289 = vmatpush2.msra.mxu0 0.0
    %290 = vmatprep.subr.mxu0 0.0
    %291 = vmatpush2.msra.mxu0 0.0
    %292 = vmatprep.subr.mxu0 0.0
    %293 = vmatpush2.msra.mxu0 0.0
    %294 = vmatprep.subr.mxu0 0.0
    %295 = vmatpush2.msra.mxu0 0.0
    %296 = vmatprep.subr.mxu0 0.0
    %297 = vmatpush2.msra.mxu0 0.0
    %298 = vmatprep.subr.mxu0 0.0
    %299 = vmatpush2.msra.mxu0 0.0
    %300 = vmatprep.subr.mxu0 0.0
    %301 = vmatpush2.msra.mxu0 0.0
    %302 = vmatprep.subr.mxu0 0.0
    %303 = vmatpush2.msra.mxu0 0.0
    %304 = vmatprep.subr.mxu0 0.0
    %305 = vmatpush2.msra.mxu0 0.0
    %306 = vmatprep.subr.mxu0 0.0
    %307 = vmatpush2.msra.mxu0 0.0
    %308 = vmatprep.subr.mxu0 0.0
    %309 = vmatpush2.msra.mxu0 0.0
    %310 = vmatprep.subr.mxu0 0.0
    %311 = vmatpush2.msra.mxu0 0.0
    %312 = vmatprep.subr.mxu0 0.0
    %313 = vmatpush2.msra.mxu0 0.0
    %314 = vmatprep.subr.mxu0 0.0
    %315 = vmatpush2.msra.mxu0 0.0
    %316 = vmatprep.subr.mxu0 0.0
    %317 = vmatpush2.msra.mxu0 0.0
    %318 = vmatprep.subr.mxu0 0.0
    %319 = vmatpush2.msra.mxu0 0.0
    %320 = vmatprep.mubr.f32.mxu0 0.0
    %321 = vmatmul.mubr.f32.gmra.mxu0 %v183
    %v322 = vpop.f32.mrf.mxu0
    %v323 = vadd.f32 0.0, %v322
    %v324 = vpop.f32.mrf.mxu0
    %325 = vdwg.mxu0
    %v326 = vmin.f32 %v177, %v323
    %v327 = vmax.f32 %v104, %v252
    %v328 = vsub.f32 %v326, %v327
    %v329 = vmax.f32 %v328, 0.0
    %v330 = vmul.f32 %v329, %v28
    %v331 = vsub.f32 %v177, %v104
    %v332 = vmax.f32 %v331, 1e-10
    %v333 = vrcp.pop %v332
    %v334 = vmul.f32 %v332, %v333
    %v335 = vsub.f32 2.0, %v334
    %v336 = vmul.f32 %v333, %v335
    %v337 = vmul.f32 %v330, %v336
    %vm338 = vcmask 261120
    %v339 = vsel %vm338, %v337, 0.0
    %340 = vadd.xlane.f32.xlu0 %v339
    %v341 = vpop.xlane.xlu0 %340
    %v342 = vrot.slane %v341, 4
    %v343 = vadd.f32 %v341, %v342
    %v344 = vrot.slane %v343, 2
    %v345 = vadd.f32 %v343, %v344
    %v346 = vrot.slane %v345, 1
    %v347 = vadd.f32 %v345, %v346
    %s348 = vtos %v347
    %v349 = vsel %vm29, %v17, 0.0
    %v350 = vrot.slane %v349, 4
    %v351 = vadd.f32 %v349, %v350
    %v352 = vrot.slane %v351, 2
    %v353 = vadd.f32 %v351, %v352
    %v354 = vrot.slane %v353, 1
    %v355 = vadd.f32 %v353, %v354
    %v356 = vmul.f32 %v355, 0.125
    %v357 = vsub.f32 %v17, %v356
    %v358 = vmul.f32 %v357, %v357
    %v359 = vsel %vm29, %v358, 0.0
    %v360 = vrot.slane %v359, 4
    %v361 = vadd.f32 %v359, %v360
    %v362 = vrot.slane %v361, 2
    %v363 = vadd.f32 %v361, %v362
    %v364 = vrot.slane %v363, 1
    %v365 = vadd.f32 %v363, %v364
    %v366 = vmul.f32 %v365, 16.0
    %v367 = vmax.f32 %v366, 1e-20
    %v368 = vrsqrt.pop %v367
    %v369 = vmul.f32 %v17, %v368
    %v371 = vsel %vm29, %v369, 0
    %373 = vmatprep.subr.mxu0 0.0
    %374 = vmatpush1.msra.mxu0 0.0
    %375 = vmatprep.subr.mxu0 0.0
    %376 = vmatpush1.msra.mxu0 0.0
    %377 = vmatprep.subr.mxu0 0.0
    %378 = vmatpush1.msra.mxu0 0.0
    %379 = vmatprep.subr.mxu0 0.0
    %380 = vmatpush1.msra.mxu0 0.0
    %381 = vmatprep.subr.mxu0 0.0
    %382 = vmatpush1.msra.mxu0 0.0
    %383 = vmatprep.subr.mxu0 0.0
    %384 = vmatpush1.msra.mxu0 0.0
    %385 = vmatprep.subr.mxu0 0.0
    %386 = vmatpush1.msra.mxu0 0.0
    %387 = vmatprep.subr.mxu0 0.0
    %388 = vmatpush1.msra.mxu0 0.0
    %389 = vmatprep.subr.mxu0 0.0
    %390 = vmatpush1.msra.mxu0 0.0
    %391 = vmatprep.subr.mxu0 0.0
    %392 = vmatpush1.msra.mxu0 0.0
    %393 = vmatprep.subr.mxu0 0.0
    %394 = vmatpush1.msra.mxu0 0.0
    %395 = vmatprep.subr.mxu0 0.0
    %396 = vmatpush1.msra.mxu0 0.0
    %397 = vmatprep.subr.mxu0 0.0
    %398 = vmatpush1.msra.mxu0 0.0
    %399 = vmatprep.subr.mxu0 0.0
    %400 = vmatpush1.msra.mxu0 0.0
    %401 = vmatprep.subr.mxu0 0.0
    %402 = vmatpush1.msra.mxu0 0.0
    %403 = vmatprep.subr.mxu0 0.0
    %404 = vmatpush1.msra.mxu0 %v35
    %405 = vmatprep.subr.mxu0 0.0
    %406 = vmatpush2.msra.mxu0 0.0
    %407 = vmatprep.subr.mxu0 0.0
    %408 = vmatpush2.msra.mxu0 0.0
    %409 = vmatprep.subr.mxu0 0.0
    %410 = vmatpush2.msra.mxu0 0.0
    %411 = vmatprep.subr.mxu0 0.0
    %412 = vmatpush2.msra.mxu0 0.0
    %413 = vmatprep.subr.mxu0 0.0
    %414 = vmatpush2.msra.mxu0 0.0
    %415 = vmatprep.subr.mxu0 0.0
    %416 = vmatpush2.msra.mxu0 0.0
    %417 = vmatprep.subr.mxu0 0.0
    %418 = vmatpush2.msra.mxu0 0.0
    %419 = vmatprep.subr.mxu0 0.0
    %420 = vmatpush2.msra.mxu0 0.0
    %421 = vmatprep.subr.mxu0 0.0
    %422 = vmatpush2.msra.mxu0 0.0
    %423 = vmatprep.subr.mxu0 0.0
    %424 = vmatpush2.msra.mxu0 0.0
    %425 = vmatprep.subr.mxu0 0.0
    %426 = vmatpush2.msra.mxu0 0.0
    %427 = vmatprep.subr.mxu0 0.0
    %428 = vmatpush2.msra.mxu0 0.0
    %429 = vmatprep.subr.mxu0 0.0
    %430 = vmatpush2.msra.mxu0 0.0
    %431 = vmatprep.subr.mxu0 0.0
    %432 = vmatpush2.msra.mxu0 0.0
    %433 = vmatprep.subr.mxu0 0.0
    %434 = vmatpush2.msra.mxu0 0.0
    %435 = vmatprep.subr.mxu0 0.0
    %436 = vmatpush2.msra.mxu0 0.0
    %437 = vmatprep.mubr.f32.mxu0 0.0
    %438 = vmatmul.mubr.f32.gmra.mxu0 %v371
    %v439 = vpop.f32.mrf.mxu0
    %v440 = vadd.f32 0.0, %v439
    %v441 = vpop.f32.mrf.mxu0
    %442 = vdwg.mxu0
    %v443 = vmul.f32 %v440, %v23
    %444 = vmatprep.subr.mxu0 0.0
    %445 = vmatpush1.msra.mxu0 0.0
    %446 = vmatprep.subr.mxu0 0.0
    %447 = vmatpush1.msra.mxu0 0.0
    %448 = vmatprep.subr.mxu0 0.0
    %449 = vmatpush1.msra.mxu0 0.0
    %450 = vmatprep.subr.mxu0 0.0
    %451 = vmatpush1.msra.mxu0 0.0
    %452 = vmatprep.subr.mxu0 0.0
    %453 = vmatpush1.msra.mxu0 0.0
    %454 = vmatprep.subr.mxu0 0.0
    %455 = vmatpush1.msra.mxu0 0.0
    %456 = vmatprep.subr.mxu0 0.0
    %457 = vmatpush1.msra.mxu0 0.0
    %458 = vmatprep.subr.mxu0 0.0
    %459 = vmatpush1.msra.mxu0 0.0
    %460 = vmatprep.subr.mxu0 0.0
    %461 = vmatpush1.msra.mxu0 0.0
    %462 = vmatprep.subr.mxu0 0.0
    %463 = vmatpush1.msra.mxu0 0.0
    %464 = vmatprep.subr.mxu0 0.0
    %465 = vmatpush1.msra.mxu0 0.0
    %466 = vmatprep.subr.mxu0 0.0
    %467 = vmatpush1.msra.mxu0 0.0
    %468 = vmatprep.subr.mxu0 0.0
    %469 = vmatpush1.msra.mxu0 0.0
    %470 = vmatprep.subr.mxu0 0.0
    %471 = vmatpush1.msra.mxu0 0.0
    %472 = vmatprep.subr.mxu0 0.0
    %473 = vmatpush1.msra.mxu0 0.0
    %474 = vmatprep.subr.mxu0 0.0
    %475 = vmatpush1.msra.mxu0 %v443
    %476 = vmatprep.subr.mxu0 0.0
    %477 = vmatpush2.msra.mxu0 0.0
    %478 = vmatprep.subr.mxu0 0.0
    %479 = vmatpush2.msra.mxu0 0.0
    %480 = vmatprep.subr.mxu0 0.0
    %481 = vmatpush2.msra.mxu0 0.0
    %482 = vmatprep.subr.mxu0 0.0
    %483 = vmatpush2.msra.mxu0 0.0
    %484 = vmatprep.subr.mxu0 0.0
    %485 = vmatpush2.msra.mxu0 0.0
    %486 = vmatprep.subr.mxu0 0.0
    %487 = vmatpush2.msra.mxu0 0.0
    %488 = vmatprep.subr.mxu0 0.0
    %489 = vmatpush2.msra.mxu0 0.0
    %490 = vmatprep.subr.mxu0 0.0
    %491 = vmatpush2.msra.mxu0 0.0
    %492 = vmatprep.subr.mxu0 0.0
    %493 = vmatpush2.msra.mxu0 0.0
    %494 = vmatprep.subr.mxu0 0.0
    %495 = vmatpush2.msra.mxu0 0.0
    %496 = vmatprep.subr.mxu0 0.0
    %497 = vmatpush2.msra.mxu0 0.0
    %498 = vmatprep.subr.mxu0 0.0
    %499 = vmatpush2.msra.mxu0 0.0
    %500 = vmatprep.subr.mxu0 0.0
    %501 = vmatpush2.msra.mxu0 0.0
    %502 = vmatprep.subr.mxu0 0.0
    %503 = vmatpush2.msra.mxu0 0.0
    %504 = vmatprep.subr.mxu0 0.0
    %505 = vmatpush2.msra.mxu0 0.0
    %506 = vmatprep.subr.mxu0 0.0
    %507 = vmatpush2.msra.mxu0 0.0
    %508 = vmatprep.mubr.f32.mxu0 0.0
    %509 = vmatmul.mubr.f32.gmra.mxu0 %v183
    %v510 = vpop.f32.mrf.mxu0
    %v511 = vadd.f32 0.0, %v510
    %v512 = vpop.f32.mrf.mxu0
    %513 = vdwg.mxu0
    %v514 = vsub.f32 %v440, %v511
    %v515 = vand.u32 2147483647, %v514
    %v517 = vsel %vm338, %v515, 0
    %519 = vmatprep.subr.mxu0 0.0
    %520 = vmatpush1.msra.mxu0 0.0
    %521 = vmatprep.subr.mxu0 0.0
    %522 = vmatpush1.msra.mxu0 0.0
    %523 = vmatprep.subr.mxu0 0.0
    %524 = vmatpush1.msra.mxu0 0.0
    %525 = vmatprep.subr.mxu0 0.0
    %526 = vmatpush1.msra.mxu0 0.0
    %527 = vmatprep.subr.mxu0 0.0
    %528 = vmatpush1.msra.mxu0 0.0
    %529 = vmatprep.subr.mxu0 0.0
    %530 = vmatpush1.msra.mxu0 0.0
    %531 = vmatprep.subr.mxu0 0.0
    %532 = vmatpush1.msra.mxu0 0.0
    %533 = vmatprep.subr.mxu0 0.0
    %534 = vmatpush1.msra.mxu0 0.0
    %535 = vmatprep.subr.mxu0 0.0
    %536 = vmatpush1.msra.mxu0 0.0
    %537 = vmatprep.subr.mxu0 0.0
    %538 = vmatpush1.msra.mxu0 0.0
    %539 = vmatprep.subr.mxu0 0.0
    %540 = vmatpush1.msra.mxu0 0.0
    %541 = vmatprep.subr.mxu0 0.0
    %542 = vmatpush1.msra.mxu0 0.0
    %543 = vmatprep.subr.mxu0 0.0
    %544 = vmatpush1.msra.mxu0 %v27
    %545 = vmatprep.subr.mxu0 0.0
    %546 = vmatpush1.msra.mxu0 %v26
    %547 = vmatprep.subr.mxu0 0.0
    %548 = vmatpush1.msra.mxu0 %v25
    %549 = vmatprep.subr.mxu0 0.0
    %550 = vmatpush1.msra.mxu0 %v24
    %551 = vmatprep.subr.mxu0 0.0
    %552 = vmatpush2.msra.mxu0 0.0
    %553 = vmatprep.subr.mxu0 0.0
    %554 = vmatpush2.msra.mxu0 0.0
    %555 = vmatprep.subr.mxu0 0.0
    %556 = vmatpush2.msra.mxu0 0.0
    %557 = vmatprep.subr.mxu0 0.0
    %558 = vmatpush2.msra.mxu0 0.0
    %559 = vmatprep.subr.mxu0 0.0
    %560 = vmatpush2.msra.mxu0 0.0
    %561 = vmatprep.subr.mxu0 0.0
    %562 = vmatpush2.msra.mxu0 0.0
    %563 = vmatprep.subr.mxu0 0.0
    %564 = vmatpush2.msra.mxu0 0.0
    %565 = vmatprep.subr.mxu0 0.0
    %566 = vmatpush2.msra.mxu0 0.0
    %567 = vmatprep.subr.mxu0 0.0
    %568 = vmatpush2.msra.mxu0 0.0
    %569 = vmatprep.subr.mxu0 0.0
    %570 = vmatpush2.msra.mxu0 0.0
    %571 = vmatprep.subr.mxu0 0.0
    %572 = vmatpush2.msra.mxu0 0.0
    %573 = vmatprep.subr.mxu0 0.0
    %574 = vmatpush2.msra.mxu0 0.0
    %575 = vmatprep.subr.mxu0 0.0
    %576 = vmatpush2.msra.mxu0 0.0
    %577 = vmatprep.subr.mxu0 0.0
    %578 = vmatpush2.msra.mxu0 0.0
    %579 = vmatprep.subr.mxu0 0.0
    %580 = vmatpush2.msra.mxu0 0.0
    %581 = vmatprep.subr.mxu0 0.0
    %582 = vmatpush2.msra.mxu0 0.0
    %583 = vmatprep.mubr.f32.mxu0 0.0
    %584 = vmatmul.mubr.f32.gmra.mxu0 %v517
    %v585 = vpop.f32.mrf.mxu0
    %v586 = vadd.f32 0.0, %v585
    %v587 = vpop.f32.mrf.mxu0
    %588 = vdwg.mxu0
    %v589 = vsub.f32 %v19, %v586
    %v590 = vmul.f32 %v589, %v589
    %v591 = vsel %vm181, %v590, 0.0
    %592 = vadd.xlane.f32.xlu0 %v591
    %v593 = vpop.xlane.xlu0 %592
    %v594 = vrot.slane %v593, 4
    %v595 = vadd.f32 %v593, %v594
    %v596 = vrot.slane %v595, 2
    %v597 = vadd.f32 %v595, %v596
    %v598 = vrot.slane %v597, 1
    %v599 = vadd.f32 %v597, %v598
    %s600 = vtos %v599
    %v601 = vstv %s600
    %v602 = vrsqrt.pop %v601
    %v603 = vmul.f32 %v601, %v602
    %vm604 = vcmp.eq.f32.partialorder %v601, inf
    %v605 = vsel %vm604, %v601, %v603
    %vm606 = vcmp.eq.f32.partialorder %v601, 0.0
    %v607 = vand.u32 %v601, 2147483648
    %v608 = vsel %vm606, %v607, %v605
    %s609 = vtos %v608
    %v610 = vsub.f32 %v18, %v17
    %v611 = vstv %s16
    %v612 = vadd.f32 %v21, %v611
    %v613 = vlaneseq
    %v614 = vshrl.u32 %v613, 7
    %v615 = vsub.s32 0, %v614
    %v616 = vrot.slane %v612, %v615
    %v617 = vsub.f32 %v616, %v17
    %v618 = vmax.f32 %v617, 0.0
    %v619 = vlaneseq
    %v620 = vshrl.u32 %v619, 7
    %v621 = vsub.s32 1, %v620
    %v622 = vrot.slane %v612, %v621
    %v623 = vsub.f32 %v18, %v622
    %v624 = vmax.f32 %v623, 0.0
    %v625 = vadd.f32 %v618, %v624
    %vm626 = vcmask 25601
    %v627 = vsel %vm626, %v21, -inf
    %628 = vmax.xlane.f32.xlu0 %v627
    %v629 = vpop.xlane.xlu0 %628
    %vm630 = vcmask 24576
    %v631 = vsel %vm630, %v21, inf
    %632 = vmin.xlane.f32.xlu0 %v631
    %v633 = vpop.xlane.xlu0 %632
    %v635 = vrot.slane %v633, 7
    %v637 = vsub.f32 %v629, %v635
    %v638 = vrcp.pop %v637
    %v639 = vmul.f32 %v637, %v638
    %v640 = vsub.f32 2.0, %v639
    %v641 = vmul.f32 %v638, %v640
    %v643 = vrot.slane %v641, 1
    %s644 = vtos %v643
    %v645 = vstv %s644
    %v647 = vmul.f32 %v610, %v645
    %v648 = vmax.f32 %v647, 1e-10
    %650 = vset.pattern.permute.xlu0 0
    %651 = vperm.xlu0 %650, %v20
    %v652 = vpop.permute.xlu0 %651
    %v654 = vmul.f32 %v648, %v652
    %v655 = vlog2.pop %v654
    %v656 = vmul.f32 %v655, 0.6931472
    %v657 = vand.u32 2147483647, %v656
    %v658 = vmax.f32 %v657, -2.0
    %v659 = vmin.f32 %v658, 100000.0
    %v660 = vsub.f32 0.0, %v610
    %v661 = vmul.f32 %v660, 1.442695
    %v662 = vpow.pop %v661
    %v663 = vmax.f32 %v662, 1e-10
    %v664 = vmul.f32 %v625, 3.0
    %v665 = vmul.f32 %v659, 20.0
    %v666 = vadd.f32 %v664, %v665
    %v667 = vmul.f32 %v663, 6.0
    %v668 = vadd.f32 %v666, %v667
    %s669 = smul.f32 %s609, 0.0011
    %s670 = smul.f32 %s348, 12.0
    %s671 = sadd.f32 %s669, %s670
    %v672 = vsel %vm29, %v668, 0.0
    %673 = vadd.xlane.f32.xlu0 %v672
    %v674 = vpop.xlane.xlu0 %673
    %v675 = vrot.slane %v674, 4
    %v676 = vadd.f32 %v674, %v675
    %v677 = vrot.slane %v676, 2
    %v678 = vadd.f32 %v676, %v677
    %v679 = vrot.slane %v678, 1
    %v680 = vadd.f32 %v678, %v679
    %s681 = vtos %v680
    %s682 = sadd.f32 %s671, %s681
    %s683 = scalar_lea.smem [#allocation3], 0
    %684 = sst [smem:[%s683]] %s682
    // Predicated region
    $region14: #{tree_loss.1} parent=1 // pred_check
      _
    $region15: #{tree_loss.1} parent=1 // pred_check_branch
      %686 = sbr.rel (0) target = $region17
    $region16: #{tree_loss.1} parent=1 // pred_region
      %s688 = ssub.s32 16, 16
      %689 = vsyncadd [#allocation4], %s688
      %692 = dma.smem_to_hbm [#allocation3], 16, %s3, [#allocation4]
    $region17: #{tree_loss.1} parent=1 // pred_fallthru
      _
    // Predicated region
    $region18: #{tree_loss.1} parent=1 // pred_check
      _
    $region19: #{tree_loss.1} parent=1 // pred_check_branch
      %694 = sbr.rel (0) target = $region21
    $region20: #{tree_loss.1} parent=1 // pred_region
      %695 = dma.done [#allocation4], 16
    $region21: #{tree_loss.1} parent=1 // pred_fallthru
      _
    %696 = sfence
    %697 = vsyncpa [#allocation4], 1

</llo_original>
